<compile_context>
chip_gen: v5e
topology: v5e:2x2
jax: 0.10.0
libtpu: 0.0.40
codegen_flags: <defaults>
</compile_context>

<pallas_src>
import math

import jax
import jax.numpy as jnp
from jax.experimental import pallas as pl
from jax.experimental.pallas import tpu as pltpu


def _weighted_l2_kernel_dynamic_w(w_ref, x_ref, y_ref, o_ref):
    # w_ref: (1, 1) float32 scalar in SMEM; x/y/o: (tm, L) lane-dense VMEM tiles.
    w = w_ref[0, 0]
    d = x_ref[...].astype(jnp.float32) - y_ref[...].astype(jnp.float32)
    o_ref[...] = (w * d * d).astype(o_ref.dtype)


def _make_static_w_kernel(w):
    # Fold a static Python weight into the kernel as a compile-time constant
    # (weakly-typed Python float -> stays f32 in the f32 compute path).
    wf = float(w)

    def kernel(x_ref, y_ref, o_ref):
        d = x_ref[...].astype(jnp.float32) - y_ref[...].astype(jnp.float32)
        o_ref[...] = (wf * (d * d)).astype(o_ref.dtype)

    return kernel


def _vmem_budget():
    """(target_tile_bytes_per_operand, vmem_limit_cap) tuned per TPU generation."""
    try:
        vmem_cap = int(pltpu.get_tpu_info().vmem_capacity_bytes)
    except Exception:
        vmem_cap = 64 << 20  # conservative (v7x-sized) if the query is unavailable
    if vmem_cap >= (96 << 20):          # v5e / v6e: 128 MiB physical VMEM
        return 8 << 20, 96 << 20
    return 8 << 20, 56 << 20            # v7x: 64 MiB physical VMEM per TensorCore


def _launch(x2, y2, w, out_dtype):
    """Run the elementwise kernel on a lane-dense (m, L) slab."""
    m, L = x2.shape
    itemsize = jnp.dtype(x2.dtype).itemsize
    sub = max(8, 32 // itemsize)                      # sublane packing for this dtype
    target_tile_bytes, vmem_cap_limit = _vmem_budget()

    tm_target = max(sub, (target_tile_bytes // (L * itemsize)) // sub * sub)
    if m <= sub:
        tm, g = m, 1                                  # tiny input: one full-height block
    else:
        half = -(-m // 2)                             # ceil(m / 2)
        half = -(-half // sub) * sub                  # sublane-align
        tm = min(tm_target, half)                     # >= 2 grid steps -> both v7x TCs busy
        g = -(-m // tm)                               # cdiv; partial last block is masked

    tile_bytes = tm * L * itemsize
    vmem_limit = int(min(max(6 * tile_bytes + (8 << 20), 16 << 20), vmem_cap_limit))

    data_spec = pl.BlockSpec((tm, L), lambda i: (i, 0))
    compiler_params = pltpu.CompilerParams(
        dimension_semantics=("parallel",),
        vmem_limit_bytes=vmem_limit,
    )
    out_shape = jax.ShapeDtypeStruct((m, L), out_dtype)

    if isinstance(w, (int, float)):
        # Static weight: no SMEM input, one fewer operand in the pipeline.
        return pl.pallas_call(
            _make_static_w_kernel(w),
            out_shape=out_shape,
            grid=(g,),
            in_specs=[data_spec, data_spec],
            out_specs=data_spec,
            compiler_params=compiler_params,
        )(x2, y2)

    # Runtime-dynamic weight: (1, 1) float32 scalar in SMEM.
    w_arr = jnp.asarray(w, dtype=jnp.float32).reshape(1, 1)
    return pl.pallas_call(
        _weighted_l2_kernel_dynamic_w,
        out_shape=out_shape,
        grid=(g,),
        in_specs=[
            pl.BlockSpec((1, 1), lambda i: (0, 0), memory_space=pltpu.SMEM),
            data_spec,
            data_spec,
        ],
        out_specs=data_spec,
        compiler_params=compiler_params,
    )(w_arr, x2, y2)


def weighted_loss(x, y, w=1.0, *, lane_width=512):
    """Elementwise weighted L2 loss: w * (x - y)**2, same shape/dtype as x."""
    assert x.shape == y.shape, "x and y must have the same shape"
    assert lane_width % 128 == 0
    orig_shape = x.shape
    dtype = x.dtype
    assert jnp.issubdtype(dtype, jnp.floating), (
        "weighted_loss implements the f32 compute path for floating dtypes")

    total = math.prod(orig_shape)
    if total == 0:
        return jnp.zeros(orig_shape, dtype)

    # Lane-dense width: largest of (lane_width, 256, 128) dividing total. The
    # flat tensor then reshapes to (m, L) for free -> zero-copy hot path.
    L = 0
    for cand in (lane_width, 256, 128):
        if total % cand == 0:
            L = cand
            break

    if L:
        m = total // L
        out2 = _launch(x.reshape(m, L), y.reshape(m, L), w, dtype)
        return out2.reshape(orig_shape)

    # TODO(synk): ragged element count (not a multiple of 128) is rare; pad the
    # flat copy up to one lane row (one extra HBM pass) and slice the result.
    L = 128
    m = -(-total // L)
    pad = m * L - total
    x2 = jnp.pad(x.reshape(-1), (0, pad)).reshape(m, L)
    y2 = jnp.pad(y.reshape(-1), (0, pad)).reshape(m, L)
    out2 = _launch(x2, y2, w, dtype)
    return out2.reshape(-1)[:total].reshape(orig_shape)


if __name__ == "__main__":
    key = jax.random.PRNGKey(0)
    kx, ky = jax.random.split(key)

    # Small NCHW-shaped example inputs (the loss is shape-agnostic elementwise).
    x = jax.random.normal(kx, (2, 4, 16, 16), dtype=jnp.float32)
    y = jax.random.normal(ky, (2, 4, 16, 16), dtype=jnp.float32)
    w = 0.5

    out = jax.block_until_ready(weighted_loss(x, y, w))
    ref = w * (x - y) ** 2
    assert out.shape == x.shape and out.dtype == x.dtype
    assert jnp.allclose(out, ref, atol=1e-6, rtol=1e-6)

    # Runtime-dynamic weight (SMEM scalar path).
    w_dyn = jnp.float32(1.75)
    out_dyn = jax.block_until_ready(weighted_loss(x, y, w_dyn))
    assert jnp.allclose(out_dyn, w_dyn * (x - y) ** 2, atol=1e-6, rtol=1e-6)

    # Ragged element count (fallback path with tiny pad + trailing slice).
    xr = jax.random.normal(kx, (3, 5, 7), dtype=jnp.float32)
    yr = jax.random.normal(ky, (3, 5, 7), dtype=jnp.float32)
    out_r = jax.block_until_ready(weighted_loss(xr, yr, 2.0))
    assert out_r.shape == xr.shape
    assert jnp.allclose(out_r, 2.0 * (xr - yr) ** 2, atol=1e-6, rtol=1e-6)

    print("KERNEL_OK")
</pallas_src>

<mosaic_0001>
module attributes {stable_mosaic.version = 11 : i64} {
  func.func @kernel(%arg0: i32, %arg1: memref<4x512xf32, #tpu.memory_space<vmem>>, %arg2: memref<4x512xf32, #tpu.memory_space<vmem>>, %arg3: memref<4x512xf32, #tpu.memory_space<vmem>>) attributes {dimension_semantics = [#tpu.dimension_semantics<parallel>], iteration_bounds = array<i64: 1>, scalar_prefetch = 0 : i64, scratch_operands = 0 : i64, tpu.core_type = #tpu.core_type<tc>, window_params = [{transform_indices = @transform_0, window_bounds = array<i64: 4, 512>}, {transform_indices = @transform_1, window_bounds = array<i64: 4, 512>}, {transform_indices = @transform_2, window_bounds = array<i64: 4, 512>}]} {
    %c0 = arith.constant 0 : index
    %c0_0 = arith.constant 0 : index
    %0 = vector.load %arg1[%c0, %c0_0] : memref<4x512xf32, #tpu.memory_space<vmem>>, vector<4x512xf32>
    %c0_1 = arith.constant 0 : index
    %c0_2 = arith.constant 0 : index
    %1 = vector.load %arg2[%c0_1, %c0_2] : memref<4x512xf32, #tpu.memory_space<vmem>>, vector<4x512xf32>
    %2 = arith.subf %0, %1 : vector<4x512xf32>
    %3 = arith.mulf %2, %2 : vector<4x512xf32>
    %cst = arith.constant 5.000000e-01 : f32
    %4 = vector.broadcast %cst : f32 to vector<4x512xf32>
    %5 = arith.mulf %4, %3 : vector<4x512xf32>
    %c0_3 = arith.constant 0 : index
    %c0_4 = arith.constant 0 : index
    %6 = vector.load %arg3[%c0_3, %c0_4] : memref<4x512xf32, #tpu.memory_space<vmem>>, vector<4x512xf32>
    tpu.vector_store %arg3[%c0_3, %c0_4], %5 {strides = array<i32>} : memref<4x512xf32, #tpu.memory_space<vmem>>, vector<4x512xf32>,
    return
  }
  func.func @transform_0(%arg0: i32) -> (i32, i32) {
    %c0_i32 = arith.constant 0 : i32
    %c0_i32_0 = arith.constant 0 : i32
    return %arg0, %c0_i32 : i32, i32
  }
  func.func @transform_1(%arg0: i32) -> (i32, i32) {
    %c0_i32 = arith.constant 0 : i32
    %c0_i32_0 = arith.constant 0 : i32
    return %arg0, %c0_i32 : i32, i32
  }
  func.func @transform_2(%arg0: i32) -> (i32, i32) {
    %c0_i32 = arith.constant 0 : i32
    %c0_i32_0 = arith.constant 0 : i32
    return %arg0, %c0_i32 : i32, i32
  }
}

</mosaic_0001>

<llo_original>
// kernel: tpu_custom_call.1
$region0: #{tpu_custom_call.1}
  #allocation0 [shape = 'u32[]', space=smem, size = 0x4, offset = 0x4, fixed_abs, tag = 'smem constant byte address 0x4 - core index']
  #allocation1 [shape = 'u32[72,128]{1,0:T(1,128)}', space=vmem, size = 0x9000, scoped, tag = 'internal scratch']
  %s0 = inlined_call_operand.hbm [shape: f32[4,512], index: 0, kind: input, shape index: {}]
  %s1 = inlined_call_operand.hbm [shape: f32[4,512], index: 1, kind: input, shape index: {}]
  %s2 = inlined_call_operand.hbm [shape: f32[4,512], index: 2, kind: output, shape index: {}]
  %s3 = sld [smem:[#allocation0]]
  $region26: #{tpu_custom_call.1} parent=0
    _
  %s5 = ssub.s32 1, %s3
  %s6 = scalar_select 0, %s5, %s3
  $region1: #{tpu_custom_call.1} parent=0
    #allocation2 [shape = 'u8[8192]{0}', space=vmem, size = 0x2000, scoped, tag = 'input window, operand 0, single buffered']
    #allocation3 [shape = 's32[1]{0}', space=sflag, size = 0x4, scoped, tag = 'scoped memory for tpu_custom_call.1']
    #allocation4 [shape = 's32[1]{0}', space=sflag, size = 0x4, scoped, tag = 'scoped memory for tpu_custom_call.1']
    #allocation5 [shape = 'u8[8192]{0}', space=vmem, size = 0x2000, scoped, tag = 'input window, operand 1, single buffered']
    #allocation6 [shape = 's32[1]{0}', space=sflag, size = 0x4, scoped, tag = 'scoped memory for tpu_custom_call.1']
    #allocation7 [shape = 'u8[8192]{0}', space=vmem, size = 0x2000, scoped, tag = 'output window, operand 0, single buffered']
    %7 = vsyncpa [#allocation3], 0
    %8 = vsyncpa [#allocation6], 0
    %9 = vsyncpa [#allocation4], 0
    // Predicated region
    $region2: #{tpu_custom_call.1} parent=1 // pred_check
      _
    $region3: #{tpu_custom_call.1} parent=1 // pred_check_branch
      %11 = sbr.rel (0) target = $region5
    $region4: #{tpu_custom_call.1} parent=1 // pred_region
      %13 = vsyncadd [#allocation3], 0
      %s15 = sshll.u32 %s0, 4
      %s16 = int_to_ptr.hbm [resolvable:$true] %s15
      %s17 = sshll.u32 [#allocation2], 4
      %s18 = int_to_ptr.vmem [resolvable:$true] %s17
      %20 = dma.hbm_to_vmem [thread:$0]  %s16, 256, %s18, [#allocation3]
    $region5: #{tpu_custom_call.1} parent=1 // pred_fallthru
      _
    // Predicated region
    $region6: #{tpu_custom_call.1} parent=1 // pred_check
      _
    $region7: #{tpu_custom_call.1} parent=1 // pred_check_branch
      %22 = sbr.rel (0) target = $region9
    $region8: #{tpu_custom_call.1} parent=1 // pred_region
      %24 = vsyncadd [#allocation6], 0
      %s26 = sshll.u32 %s1, 4
      %s27 = int_to_ptr.hbm [resolvable:$true] %s26
      %s28 = sshll.u32 [#allocation5], 4
      %s29 = int_to_ptr.vmem [resolvable:$true] %s28
      %31 = dma.hbm_to_vmem [thread:$0]  %s27, 256, %s29, [#allocation6]
    $region9: #{tpu_custom_call.1} parent=1 // pred_fallthru
      _
    // Predicated region
    $region10: #{tpu_custom_call.1} parent=1 // pred_check
      _
    $region11: #{tpu_custom_call.1} parent=1 // pred_check_branch
      %33 = sbr.rel (0) target = $region13
    $region12: #{tpu_custom_call.1} parent=1 // pred_region
      %35 = dma.done [#allocation3], 256
    $region13: #{tpu_custom_call.1} parent=1 // pred_fallthru
      _
    // Predicated region
    $region14: #{tpu_custom_call.1} parent=1 // pred_check
      _
    $region15: #{tpu_custom_call.1} parent=1 // pred_check_branch
      %37 = sbr.rel (0) target = $region17
    $region16: #{tpu_custom_call.1} parent=1 // pred_region
      %39 = dma.done [#allocation6], 256
    $region17: #{tpu_custom_call.1} parent=1 // pred_fallthru
      _
    %v40 = vld [vmem:[#allocation2] sm:$0xff]
    %v41 = vld [vmem:[#allocation2 + $0x8] sm:$0xff]
    %v42 = vld [vmem:[#allocation5] sm:$0xff]
    %v43 = vld [vmem:[#allocation5 + $0x8] sm:$0xff]
    %v44 = vsub.f32 %v40, %v42
    %v45 = vsub.f32 %v41, %v43
    %v46 = vmul.f32 %v44, %v44
    %v47 = vmul.f32 %v45, %v45
    %v48 = vmul.f32 %v46, 0.5
    %v49 = vmul.f32 %v47, 0.5
    %50 = vst [vmem:[#allocation7] sm:$0xff] %v48
    %51 = vst [vmem:[#allocation7 + $0x8] sm:$0xff] %v49
    // Predicated region
    $region18: #{tpu_custom_call.1} parent=1 // pred_check
      _
    $region19: #{tpu_custom_call.1} parent=1 // pred_check_branch
      %53 = sbr.rel (0) target = $region21
    $region20: #{tpu_custom_call.1} parent=1 // pred_region
      %55 = vsyncadd [#allocation4], 0
      %s57 = sshll.u32 [#allocation7], 4
      %s58 = int_to_ptr.vmem [resolvable:$true] %s57
      %s59 = sshll.u32 %s2, 4
      %s60 = int_to_ptr.hbm [resolvable:$true] %s59
      %62 = dma.vmem_to_hbm [thread:$0]  %s58, 256, %s60, [#allocation4]
    $region21: #{tpu_custom_call.1} parent=1 // pred_fallthru
      _
    // Predicated region
    $region22: #{tpu_custom_call.1} parent=1 // pred_check
      _
    $region23: #{tpu_custom_call.1} parent=1 // pred_check_branch
      %64 = sbr.rel (0) target = $region25
    $region24: #{tpu_custom_call.1} parent=1 // pred_region
      %66 = dma.done [#allocation4], 256
    $region25: #{tpu_custom_call.1} parent=1 // pred_fallthru
      _
    %67 = vsyncpa [#allocation3], 1
    %68 = vsyncpa [#allocation6], 1
    %69 = vsyncpa [#allocation4], 1

</llo_original>
